<compile_context>
chip_gen: v7x
topology: tpu7x:2x2x1
jax: 0.10.0
libtpu: 0.0.40
codegen_flags: <defaults>
</compile_context>

<pallas_src>
import math
import jax
import jax.numpy as jnp
from jax.experimental import pallas as pl
from jax.experimental.pallas import tpu as pltpu

_MiB = 1024 * 1024


def _gelu_exact(x):
    # torch.nn.functional.gelu default: exact erf formulation, computed in f32.
    # (tanh-approx GELU would move work to the EUP slot but changes numerics.)
    return 0.5 * x * (1.0 + jax.lax.erf(x * (1.0 / math.sqrt(2.0))))


# ---------------------------------------------------------------------------
# Kernels
# ---------------------------------------------------------------------------

def _mlp_kernel_resident(x_ref, w1_ref, b1_ref, w2_ref, b2_ref, o_ref):
    # Weights fully resident in VMEM; single grid axis over row tiles.
    xb = x_ref[...].astype(w1_ref.dtype)                      # bf16 MXU operand
    h = jnp.dot(xb, w1_ref[...], preferred_element_type=jnp.float32)
    h = _gelu_exact(h + b1_ref[...].astype(jnp.float32))
    # dropout -> identity (inference).
    # TODO(synk): training-mode dropout (pltpu.prng_* masking) not implemented.
    out = jnp.dot(h.astype(w2_ref.dtype), w2_ref[...],
                  preferred_element_type=jnp.float32)
    out = out + b2_ref[...].astype(jnp.float32)
    # second dropout -> identity (inference).
    o_ref[...] = out.astype(o_ref.dtype)


def _mlp_kernel_streamed(x_ref, w1_ref, b1_ref, w2_ref, b2_ref, o_ref, acc_ref):
    # Grid = (M // tm, D // td).  Axis 0 ("parallel"): row tiles of tokens.
    # Axis 1 ("arbitrary"): reduction over mlp_dim chunks for fc2; partial
    # products accumulate in a resident f32 VMEM scratch.
    d = pl.program_id(1)

    @pl.when(d == 0)
    def _init():
        acc_ref[...] = jnp.zeros_like(acc_ref)

    xb = x_ref[...].astype(w1_ref.dtype)                      # bf16 MXU operand
    h = jnp.dot(xb, w1_ref[...], preferred_element_type=jnp.float32)
    h = _gelu_exact(h + b1_ref[...].astype(jnp.float32))
    # dropout -> identity (inference).
    acc_ref[...] += jnp.dot(h.astype(w2_ref.dtype), w2_ref[...],
                            preferred_element_type=jnp.float32)

    @pl.when(d == pl.num_programs(1) - 1)
    def _finalize():
        out = acc_ref[...] + b2_ref[...].astype(jnp.float32)
        # second dropout -> identity (inference).
        o_ref[...] = out.astype(o_ref.dtype)


# ---------------------------------------------------------------------------
# Tiling / VMEM helpers
# ---------------------------------------------------------------------------

def _vmem_capacity_bytes():
    try:
        info = pltpu.get_tpu_info()
        cap = getattr(info, "vmem_capacity_bytes", None)
        if cap:
            return int(cap)
    except Exception:
        pass
    return 64 * _MiB      # conservative default: v7x per-TensorCore VMEM


def _spec(block_shape, index_map, buffers=None):
    """BlockSpec with optional explicit buffer count (constant blocks -> 1)."""
    if buffers is not None:
        try:
            return pl.BlockSpec(block_shape, index_map,
                                pipeline_mode=pl.Buffered(buffers))
        except Exception:
            pass
    return pl.BlockSpec(block_shape, index_map)


def _pick_tm(M, target):
    if M <= target:
        return M
    # Prefer a multiple of 16 that divides M: no padded (wasted) last tile.
    for cand in range(target, 127, -16):
        if M % cand == 0:
            return cand
    return target         # fall back to cdiv padding (last tile masked)


def _resident_vmem_need(tm, H, D, xb, ob, cb):
    return (2 * tm * H * xb                 # x tiles (double-buffered)
            + 2 * tm * H * ob               # out tiles (double-buffered)
            + 2 * (H * D + D * H) * cb      # weights (conservatively x2 buffers)
            + 2 * (D + H) * 4               # biases (f32)
            + tm * D * 4 + tm * D * cb      # fc1/GELU intermediate (f32 + bf16)
            + tm * H * 4)                   # fc2 f32 result before final cast


def _streamed_vmem_need(tm, td, H, xb, ob, cb):
    return (2 * tm * H * xb
            + 2 * tm * H * ob
            + 2 * (H * td + td * H) * cb    # weight chunks (double-buffered)
            + 2 * (td + H) * 4
            + tm * H * 4                    # f32 accumulator scratch
            + tm * td * 4 + tm * td * cb)   # fc1/GELU intermediate (f32 + bf16)


# ---------------------------------------------------------------------------
# Wrapper
# ---------------------------------------------------------------------------

def mlp_forward(x, w1, b1, w2, b2, *, tm=None, td=None,
                compute_dtype=jnp.bfloat16, weight_resident=None):
    """y = fc2(gelu(fc1(x))), dropout = identity (inference).

    x: (B, S, H).  w1: (H, D), b1: (D,), w2: (D, H), b2: (H,).
    Matmuls run with bf16 MXU operands and f32 accumulation.
    """
    B, S, H = x.shape
    D = w1.shape[1]
    M = B * S

    x2 = x.reshape(M, H)
    w1c = w1.astype(compute_dtype)
    w2c = w2.astype(compute_dtype)
    b1_2 = b1.reshape(1, D).astype(jnp.float32)
    b2_2 = b2.reshape(1, H).astype(jnp.float32)

    xb = jnp.dtype(x2.dtype).itemsize
    ob = jnp.dtype(x.dtype).itemsize
    cb = jnp.dtype(compute_dtype).itemsize
    wbytes_total = (H * D + D * H) * cb

    vmem_cap = _vmem_capacity_bytes()
    # Never hand Mosaic the full physical VMEM; leave internal-scratch headroom.
    usable = max(32 * _MiB, min(int(0.85 * vmem_cap), vmem_cap - 8 * _MiB))

    # Bigger row tiles on parts with more VMEM (v5e/v6e: 128 MiB, v7x: 64 MiB).
    tm_target = 1024 if vmem_cap > 96 * _MiB else 512
    user_tm = tm
    if tm is None:
        tm = _pick_tm(M, tm_target)

    if weight_resident is None:
        weight_resident = _resident_vmem_need(tm, H, D, xb, ob, cb) <= usable
        if not weight_resident and user_tm is None and tm > 256:
            # Shrinking the row tile to keep weights resident usually beats
            # re-streaming the full weights once per row tile.
            if _resident_vmem_need(256, H, D, xb, ob, cb) <= usable:
                weight_resident, tm = True, 256

    n_m = pl.cdiv(M, tm)
    flops = 4 * M * H * D            # fc1 + fc2 matmuls
    transcendentals = M * D          # erf in GELU

    if weight_resident:
        need = _resident_vmem_need(tm, H, D, xb, ob, cb)
        vmem_limit = int(min(usable, max(32 * _MiB, int(1.5 * need))))
        cost = pl.CostEstimate(
            flops=flops, transcendentals=transcendentals,
            bytes_accessed=int(M * H * (xb + ob) + wbytes_total + (D + H) * 4))
        grid_spec = pltpu.PrefetchScalarGridSpec(
            num_scalar_prefetch=0,
            grid=(n_m,),
            in_specs=[
                _spec((tm, H), lambda i: (i, 0)),              # x row tile
                _spec((H, D), lambda i: (0, 0), buffers=1),    # w1 resident
                _spec((1, D), lambda i: (0, 0), buffers=1),    # b1 resident
                _spec((D, H), lambda i: (0, 0), buffers=1),    # w2 resident
                _spec((1, H), lambda i: (0, 0), buffers=1),    # b2 resident
            ],
            out_specs=pl.BlockSpec((tm, H), lambda i: (i, 0)),
        )
        out = pl.pallas_call(
            _mlp_kernel_resident,
            out_shape=jax.ShapeDtypeStruct((M, H), x.dtype),
            grid_spec=grid_spec,
            compiler_params=pltpu.CompilerParams(
                dimension_semantics=("parallel",),
                vmem_limit_bytes=vmem_limit),
            cost_estimate=cost,
        )(x2, w1c, b1_2, w2c, b2_2)
    else:
        if td is None:
            td_cands = [c for c in (1024, 512, 256, 128) if D % c == 0] or [D]
            td = td_cands[-1]
            for c in td_cands:
                if _streamed_vmem_need(tm, c, H, xb, ob, cb) <= usable:
                    td = c
                    break
        assert D % td == 0, "td must divide mlp_dim"
        n_d = D // td
        need = _streamed_vmem_need(tm, td, H, xb, ob, cb)
        vmem_limit = int(min(usable, max(32 * _MiB, int(1.5 * need))))
        cost = pl.CostEstimate(
            flops=flops, transcendentals=transcendentals,
            bytes_accessed=int(M * H * (xb + ob)
                               + n_m * (wbytes_total + (D + H) * 4)))
        grid_spec = pltpu.PrefetchScalarGridSpec(
            num_scalar_prefetch=0,
            grid=(n_m, n_d),
            in_specs=[
                _spec((tm, H), lambda i, d: (i, 0)),            # x row tile
                _spec((H, td), lambda i, d: (0, d)),            # w1 chunk
                _spec((1, td), lambda i, d: (0, d)),            # b1 chunk
                _spec((td, H), lambda i, d: (d, 0)),            # w2 chunk
                _spec((1, H), lambda i, d: (0, 0), buffers=1),  # b2 constant
            ],
            out_specs=pl.BlockSpec((tm, H), lambda i, d: (i, 0)),
            scratch_shapes=[pltpu.VMEM((tm, H), jnp.float32)],
        )
        out = pl.pallas_call(
            _mlp_kernel_streamed,
            out_shape=jax.ShapeDtypeStruct((M, H), x.dtype),
            grid_spec=grid_spec,
            compiler_params=pltpu.CompilerParams(
                dimension_semantics=("parallel", "arbitrary"),
                vmem_limit_bytes=vmem_limit),
            cost_estimate=cost,
        )(x2, w1c, b1_2, w2c, b2_2)

    return out.reshape(B, S, H)


# ---------------------------------------------------------------------------
# Reference / init helpers
# ---------------------------------------------------------------------------

def xavier_uniform(key, fan_in, fan_out, dtype=jnp.float32):
    # matches torch.nn.init.xavier_uniform_ for a Linear weight of shape
    # (out, in); we directly build the (in, out) transposed matrix.
    bound = math.sqrt(6.0 / (fan_in + fan_out))
    return jax.random.uniform(key, (fan_in, fan_out), dtype=dtype,
                              minval=-bound, maxval=bound)


def _reference(x, w1, b1, w2, b2, compute_dtype=jnp.bfloat16):
    # Mixed-precision reference matching the kernel numerics
    # (bf16 MXU operands, f32 accumulation, f32 GELU/bias).
    B, S, H = x.shape
    cd = compute_dtype
    x2 = x.reshape(-1, H).astype(cd)
    h = jnp.dot(x2, w1.astype(cd), preferred_element_type=jnp.float32)
    h = _gelu_exact(h + b1.astype(jnp.float32))
    out = jnp.dot(h.astype(cd), w2.astype(cd),
                  preferred_element_type=jnp.float32)
    out = out + b2.astype(jnp.float32)
    return out.reshape(B, S, H).astype(x.dtype)


if __name__ == "__main__":
    # --- test 1: module-spec demo shapes (hidden=32, mlp_dim=64, B=2, S=8) ---
    hidden_size, mlp_dim, B, S = 32, 64, 2, 8
    kx, kw1, kb1, kw2, kb2 = jax.random.split(jax.random.PRNGKey(0), 5)
    x = jax.random.normal(kx, (B, S, hidden_size), dtype=jnp.float32)
    w1 = xavier_uniform(kw1, hidden_size, mlp_dim)                 # (H, D)
    b1 = 1e-6 * jax.random.normal(kb1, (mlp_dim,), jnp.float32)
    w2 = xavier_uniform(kw2, mlp_dim, hidden_size)                 # (D, H)
    b2 = 1e-6 * jax.random.normal(kb2, (hidden_size,), jnp.float32)

    y = jax.block_until_ready(mlp_forward(x, w1, b1, w2, b2))
    ref = _reference(x, w1, b1, w2, b2)
    assert y.shape == x.shape
    assert jnp.allclose(y, ref, atol=1e-2, rtol=1e-2), "mismatch (resident path)"

    # --- test 2: streamed-weights path (D-chunk reduction) + row tiling ---
    hidden_size, mlp_dim, B, S = 128, 1024, 4, 132     # M = 528
    kx, kw1, kb1, kw2, kb2 = jax.random.split(jax.random.PRNGKey(1), 5)
    x = jax.random.normal(kx, (B, S, hidden_size), dtype=jnp.float32)
    w1 = xavier_uniform(kw1, hidden_size, mlp_dim)
    b1 = 1e-6 * jax.random.normal(kb1, (mlp_dim,), jnp.float32)
    w2 = xavier_uniform(kw2, mlp_dim, hidden_size)
    b2 = 1e-6 * jax.random.normal(kb2, (hidden_size,), jnp.float32)

    y = jax.block_until_ready(
        mlp_forward(x, w1, b1, w2, b2, weight_resident=False, td=256))
    ref = _reference(x, w1, b1, w2, b2)
    assert jnp.allclose(y, ref, atol=1e-2, rtol=1e-2), "mismatch (streamed path)"

    # --- test 3: weight-resident path with a ragged (masked) last row tile ---
    y = jax.block_until_ready(mlp_forward(x, w1, b1, w2, b2, tm=256))
    assert jnp.allclose(y, ref, atol=1e-2, rtol=1e-2), "mismatch (ragged row tile)"

    print("KERNEL_OK")
</pallas_src>

<mosaic_0001>
module attributes {stable_mosaic.version = 11 : i64} {
  func.func @_mlp_kernel_resident(%arg0: i32, %arg1: memref<16x32xf32, #tpu.memory_space<vmem>>, %arg2: memref<32x64xbf16, #tpu.memory_space<vmem>>, %arg3: memref<1x64xf32, #tpu.memory_space<vmem>>, %arg4: memref<64x32xbf16, #tpu.memory_space<vmem>>, %arg5: memref<1x32xf32, #tpu.memory_space<vmem>>, %arg6: memref<16x32xf32, #tpu.memory_space<vmem>>) attributes {dimension_semantics = [#tpu.dimension_semantics<parallel>], iteration_bounds = array<i64: 1>, scalar_prefetch = 0 : i64, scratch_operands = 0 : i64, tpu.core_type = #tpu.core_type<tc>, window_params = [{transform_indices = @transform_0, window_bounds = array<i64: 16, 32>}, {pipeline_mode = #tpu.pipeline_mode<synchronous>, transform_indices = @transform_1, window_bounds = array<i64: 32, 64>}, {pipeline_mode = #tpu.pipeline_mode<synchronous>, transform_indices = @transform_2, window_bounds = array<i64: 1, 64>}, {pipeline_mode = #tpu.pipeline_mode<synchronous>, transform_indices = @transform_3, window_bounds = array<i64: 64, 32>}, {pipeline_mode = #tpu.pipeline_mode<synchronous>, transform_indices = @transform_4, window_bounds = array<i64: 1, 32>}, {transform_indices = @transform_5, window_bounds = array<i64: 16, 32>}]} {
    %c0 = arith.constant 0 : index
    %c0_0 = arith.constant 0 : index
    %0 = vector.load %arg1[%c0, %c0_0] : memref<16x32xf32, #tpu.memory_space<vmem>>, vector<16x32xf32>
    %1 = arith.truncf %0 : vector<16x32xf32> to vector<16x32xbf16>
    %c0_1 = arith.constant 0 : index
    %c0_2 = arith.constant 0 : index
    %2 = vector.load %arg2[%c0_1, %c0_2] : memref<32x64xbf16, #tpu.memory_space<vmem>>, vector<32x64xbf16>
    %cst = arith.constant dense<0.000000e+00> : vector<16x64xf32>
    %3 = tpu.matmul %1, %2, %cst {dimension_numbers = #tpu.dot_dimension_numbers<[1], [0], [0], [1], [0, 0, 1, 1], [], []>} : vector<16x32xbf16>, vector<32x64xbf16>, vector<16x64xf32> -> vector<16x64xf32>
    %c0_3 = arith.constant 0 : index
    %c0_4 = arith.constant 0 : index
    %4 = vector.load %arg3[%c0_3, %c0_4] : memref<1x64xf32, #tpu.memory_space<vmem>>, vector<1x64xf32>
    %5 = vector.broadcast %4 : vector<1x64xf32> to vector<16x64xf32>
    %6 = arith.addf %3, %5 : vector<16x64xf32>
    %cst_5 = arith.constant 5.000000e-01 : f32
    %7 = vector.broadcast %cst_5 : f32 to vector<16x64xf32>
    %8 = arith.mulf %7, %6 : vector<16x64xf32>
    %cst_6 = arith.constant 0.707106769 : f32
    %9 = vector.broadcast %cst_6 : f32 to vector<16x64xf32>
    %10 = arith.mulf %6, %9 : vector<16x64xf32>
    %11 = math.erf %10 : vector<16x64xf32>
    %cst_7 = arith.constant 1.000000e+00 : f32
    %12 = vector.broadcast %cst_7 : f32 to vector<16x64xf32>
    %13 = arith.addf %12, %11 : vector<16x64xf32>
    %14 = arith.mulf %8, %13 : vector<16x64xf32>
    %15 = arith.truncf %14 : vector<16x64xf32> to vector<16x64xbf16>
    %c0_8 = arith.constant 0 : index
    %c0_9 = arith.constant 0 : index
    %16 = vector.load %arg4[%c0_8, %c0_9] : memref<64x32xbf16, #tpu.memory_space<vmem>>, vector<64x32xbf16>
    %cst_10 = arith.constant dense<0.000000e+00> : vector<16x32xf32>
    %17 = tpu.matmul %15, %16, %cst_10 {dimension_numbers = #tpu.dot_dimension_numbers<[1], [0], [0], [1], [0, 0, 1, 1], [], []>} : vector<16x64xbf16>, vector<64x32xbf16>, vector<16x32xf32> -> vector<16x32xf32>
    %c0_11 = arith.constant 0 : index
    %c0_12 = arith.constant 0 : index
    %18 = vector.load %arg5[%c0_11, %c0_12] : memref<1x32xf32, #tpu.memory_space<vmem>>, vector<1x32xf32>
    %19 = vector.broadcast %18 : vector<1x32xf32> to vector<16x32xf32>
    %20 = arith.addf %17, %19 : vector<16x32xf32>
    %c0_13 = arith.constant 0 : index
    %c0_14 = arith.constant 0 : index
    %21 = vector.load %arg6[%c0_13, %c0_14] : memref<16x32xf32, #tpu.memory_space<vmem>>, vector<16x32xf32>
    tpu.vector_store %arg6[%c0_13, %c0_14], %20 {strides = array<i32>} : memref<16x32xf32, #tpu.memory_space<vmem>>, vector<16x32xf32>,
    return
  }
  func.func @transform_0(%arg0: i32) -> (i32, i32) {
    %c0_i32 = arith.constant 0 : i32
    %c0_i32_0 = arith.constant 0 : i32
    return %arg0, %c0_i32 : i32, i32
  }
  func.func @transform_1(%arg0: i32) -> (i32, i32) {
    %c0_i32 = arith.constant 0 : i32
    %c0_i32_0 = arith.constant 0 : i32
    %c0_i32_1 = arith.constant 0 : i32
    return %c0_i32, %c0_i32_0 : i32, i32
  }
  func.func @transform_2(%arg0: i32) -> (i32, i32) {
    %c0_i32 = arith.constant 0 : i32
    %c0_i32_0 = arith.constant 0 : i32
    %c0_i32_1 = arith.constant 0 : i32
    return %c0_i32, %c0_i32_0 : i32, i32
  }
  func.func @transform_3(%arg0: i32) -> (i32, i32) {
    %c0_i32 = arith.constant 0 : i32
    %c0_i32_0 = arith.constant 0 : i32
    %c0_i32_1 = arith.constant 0 : i32
    return %c0_i32, %c0_i32_0 : i32, i32
  }
  func.func @transform_4(%arg0: i32) -> (i32, i32) {
    %c0_i32 = arith.constant 0 : i32
    %c0_i32_0 = arith.constant 0 : i32
    %c0_i32_1 = arith.constant 0 : i32
    return %c0_i32, %c0_i32_0 : i32, i32
  }
  func.func @transform_5(%arg0: i32) -> (i32, i32) {
    %c0_i32 = arith.constant 0 : i32
    %c0_i32_0 = arith.constant 0 : i32
    return %arg0, %c0_i32 : i32, i32
  }
}

</mosaic_0001>

<llo_original>
// kernel: tpu_custom_call.1
$region0: #{tpu_custom_call.1}
  #allocation0 [shape = 'u32[]', space=smem, size = 0x4, offset = 0x4, fixed_abs, tag = 'smem constant byte address 0x4 - core index']
  #allocation1 [shape = 'u32[144,128]{1,0:T(1,128)}', space=vmem, size = 0x12000, scoped, tag = 'internal scratch']
  %s0 = inlined_call_operand.vmem [shape: f32[16,32], index: 0, kind: input, shape index: {}]
  %s1 = inlined_call_operand.vmem [shape: bf16[32,64], index: 1, kind: input, shape index: {}]
  %s2 = inlined_call_operand.vmem [shape: f32[1,64], index: 2, kind: input, shape index: {}]
  %s3 = inlined_call_operand.vmem [shape: bf16[64,32], index: 3, kind: input, shape index: {}]
  %s4 = inlined_call_operand.vmem [shape: f32[1,32], index: 4, kind: input, shape index: {}]
  %s5 = inlined_call_operand.hbm [shape: f32[16,32], index: 5, kind: output, shape index: {}]
  %s6 = sld [smem:[#allocation0]]
  $region30: #{tpu_custom_call.1} parent=0
    _
  %s8 = ssub.s32 1, %s6
  %s9 = scalar_select 0, %s8, %s6
  $region1: #{tpu_custom_call.1} parent=0
    #allocation2 [shape = 'u8[8192]{0}', space=vmem, size = 0x2000, scoped, tag = 'output window, operand 0, single buffered']
    #allocation3 [shape = 's32[1]{0}', space=sflag, size = 0x4, scoped, tag = 'scoped memory for tpu_custom_call.1']
    %10 = vsyncpa [#allocation3], 0
    // Predicated region
    $region2: #{tpu_custom_call.1} parent=1 // pred_check
      _
    $region3: #{tpu_custom_call.1} parent=1 // pred_check_branch
      %12 = sbr.rel (0) target = $region5
    $region4: #{tpu_custom_call.1} parent=1 // pred_region
      _
    $region5: #{tpu_custom_call.1} parent=1 // pred_fallthru
      _
    // Predicated region
    $region6: #{tpu_custom_call.1} parent=1 // pred_check
      _
    $region7: #{tpu_custom_call.1} parent=1 // pred_check_branch
      %14 = sbr.rel (0) target = $region9
    $region8: #{tpu_custom_call.1} parent=1 // pred_region
      _
    $region9: #{tpu_custom_call.1} parent=1 // pred_fallthru
      _
    // Predicated region
    $region10: #{tpu_custom_call.1} parent=1 // pred_check
      _
    $region11: #{tpu_custom_call.1} parent=1 // pred_check_branch
      %16 = sbr.rel (0) target = $region13
    $region12: #{tpu_custom_call.1} parent=1 // pred_region
      _
    $region13: #{tpu_custom_call.1} parent=1 // pred_fallthru
      _
    // Predicated region
    $region14: #{tpu_custom_call.1} parent=1 // pred_check
      _
    $region15: #{tpu_custom_call.1} parent=1 // pred_check_branch
      %18 = sbr.rel (0) target = $region17
    $region16: #{tpu_custom_call.1} parent=1 // pred_region
      _
    $region17: #{tpu_custom_call.1} parent=1 // pred_fallthru
      _
    // Predicated region
    $region18: #{tpu_custom_call.1} parent=1 // pred_check
      _
    $region19: #{tpu_custom_call.1} parent=1 // pred_check_branch
      %20 = sbr.rel (0) target = $region21
    $region20: #{tpu_custom_call.1} parent=1 // pred_region
      _
    $region21: #{tpu_custom_call.1} parent=1 // pred_fallthru
      _
    %v22 = vld [vmem:[%s0] sm:$0xff]
    %v23 = vld [vmem:[%s0 + $0x8] sm:$0xff]
    %v24 = vpack.c.bf16 %v23, %v22
    %v25 = vld [vmem:[%s1] sm:$0xf]
    %v26 = vld [vmem:[%s1 + $0x4] sm:$0xf]
    %v27 = vld [vmem:[%s1 + $0x8] sm:$0xf]
    %v28 = vld [vmem:[%s1 + $0xc] sm:$0xf]
    %v29 = vld [vmem:[%s2] sm:$0x1]
    %v31 = vlaneseq
    %v32 = vshrl.u32 %v31, 7
    %v33 = vsub.s32 0, %v32
    %v34 = vrot.slane %v29, %v33
    %v40 = vunpack.c.l.b16 %v25
    %v41 = vunpack.c.l.b16 %v26
    %v42 = vunpack.c.l.b16 %v27
    %v43 = vunpack.c.l.b16 %v28
    %v44 = vpack.c.b16 %v41, %v40
    %v45 = vpack.c.b16 %v43, %v42
    %vm48 = vcmask 261120
    %v50 = vsel %vm48, %v24, 0
    %52 = vmatprep.subr.bf16.mxu0 0
    %53 = vmatpush1.bf16.msra.mxu0 %v44
    %54 = vmatprep.subr.bf16.mxu0 0
    %55 = vmatpush1.bf16.msra.mxu0 %v45
    %56 = vmatprep.subr.bf16.mxu0 0
    %57 = vmatpush1.bf16.msra.mxu0 0
    %58 = vmatprep.subr.bf16.mxu0 0
    %59 = vmatpush1.bf16.msra.mxu0 0
    %60 = vmatprep.subr.bf16.mxu0 0
    %61 = vmatpush1.bf16.msra.mxu0 0
    %62 = vmatprep.subr.bf16.mxu0 0
    %63 = vmatpush1.bf16.msra.mxu0 0
    %64 = vmatprep.subr.bf16.mxu0 0
    %65 = vmatpush1.bf16.msra.mxu0 0
    %66 = vmatprep.subr.bf16.mxu0 0
    %67 = vmatpush1.bf16.msra.mxu0 0
    %68 = vmatprep.subr.bf16.mxu0 0
    %69 = vmatpush1.bf16.msra.mxu0 0
    %70 = vmatprep.subr.bf16.mxu0 0
    %71 = vmatpush1.bf16.msra.mxu0 0
    %72 = vmatprep.subr.bf16.mxu0 0
    %73 = vmatpush1.bf16.msra.mxu0 0
    %74 = vmatprep.subr.bf16.mxu0 0
    %75 = vmatpush1.bf16.msra.mxu0 0
    %76 = vmatprep.subr.bf16.mxu0 0
    %77 = vmatpush1.bf16.msra.mxu0 0
    %78 = vmatprep.subr.bf16.mxu0 0
    %79 = vmatpush1.bf16.msra.mxu0 0
    %80 = vmatprep.subr.bf16.mxu0 0
    %81 = vmatpush1.bf16.msra.mxu0 0
    %82 = vmatprep.subr.bf16.mxu0 0
    %83 = vmatpush1.bf16.msra.mxu0 0
    %84 = vmatprep.mubr.bf16.mxu0 0
    %85 = vmatmul.mubr.bf16.gmra.mrb[0].mxu0 %v50
    %v86 = vpop.f32.mrb[0].mxu0
    %v87 = vadd.f32 %v34, %v86
    %v88 = vpop.f32.mrb[0].mxu0
    %v89 = vpop.f32.mrb[0].mxu0
    %v90 = vadd.f32 %v34, %v89
    %v91 = vpop.f32.mrb[0].mxu0
    %92 = vdwg.mxu0
    %v93 = vmul.f32 %v87, 0.5
    %v94 = vmul.f32 %v90, 0.5
    %v95 = vmul.f32 %v87, 0.70710677
    %v96 = vmul.f32 %v90, 0.70710677
    %v97 = verf.f32.pop %v95
    %v98 = verf.f32.pop %v96
    %v99 = vadd.f32 %v97, 1.0
    %v100 = vadd.f32 %v98, 1.0
    %v101 = vmul.f32 %v93, %v99
    %v102 = vmul.f32 %v94, %v100
    %v103 = vpack.c.bf16 %v102, %v101
    %v104 = vld [vmem:[%s3] sm:$0xf]
    %v105 = vld [vmem:[%s3 + $0x4] sm:$0xf]
    %v106 = vld [vmem:[%s3 + $0x8] sm:$0xf]
    %v107 = vld [vmem:[%s3 + $0xc] sm:$0xf]
    %v108 = vld [vmem:[%s3 + $0x10] sm:$0xf]
    %v109 = vld [vmem:[%s3 + $0x14] sm:$0xf]
    %v110 = vld [vmem:[%s3 + $0x18] sm:$0xf]
    %v111 = vld [vmem:[%s3 + $0x1c] sm:$0xf]
    %v112 = vld [vmem:[%s4] sm:$0x1]
    %v114 = vlaneseq
    %v115 = vshrl.u32 %v114, 7
    %v116 = vsub.s32 0, %v115
    %v117 = vrot.slane %v112, %v116
    %v127 = vunpack.c.l.b16 %v104
    %v128 = vunpack.c.l.b16 %v105
    %v129 = vunpack.c.l.b16 %v106
    %v130 = vunpack.c.l.b16 %v107
    %v131 = vunpack.c.l.b16 %v108
    %v132 = vunpack.c.l.b16 %v109
    %v133 = vunpack.c.l.b16 %v110
    %v134 = vunpack.c.l.b16 %v111
    %v135 = vpack.c.b16 %v128, %v127
    %v136 = vpack.c.b16 %v130, %v129
    %v137 = vpack.c.b16 %v132, %v131
    %v138 = vpack.c.b16 %v134, %v133
    %vm143 = vcmask 523264
    %v145 = vsel %vm143, %v103, 0
    %147 = vmatprep.subr.bf16.mxu0 0
    %148 = vmatpush1.bf16.msra.mxu0 %v135
    %149 = vmatprep.subr.bf16.mxu0 0
    %150 = vmatpush1.bf16.msra.mxu0 %v136
    %151 = vmatprep.subr.bf16.mxu0 0
    %152 = vmatpush1.bf16.msra.mxu0 %v137
    %153 = vmatprep.subr.bf16.mxu0 0
    %154 = vmatpush1.bf16.msra.mxu0 %v138
    %155 = vmatprep.subr.bf16.mxu0 0
    %156 = vmatpush1.bf16.msra.mxu0 0
    %157 = vmatprep.subr.bf16.mxu0 0
    %158 = vmatpush1.bf16.msra.mxu0 0
    %159 = vmatprep.subr.bf16.mxu0 0
    %160 = vmatpush1.bf16.msra.mxu0 0
    %161 = vmatprep.subr.bf16.mxu0 0
    %162 = vmatpush1.bf16.msra.mxu0 0
    %163 = vmatprep.subr.bf16.mxu0 0
    %164 = vmatpush1.bf16.msra.mxu0 0
    %165 = vmatprep.subr.bf16.mxu0 0
    %166 = vmatpush1.bf16.msra.mxu0 0
    %167 = vmatprep.subr.bf16.mxu0 0
    %168 = vmatpush1.bf16.msra.mxu0 0
    %169 = vmatprep.subr.bf16.mxu0 0
    %170 = vmatpush1.bf16.msra.mxu0 0
    %171 = vmatprep.subr.bf16.mxu0 0
    %172 = vmatpush1.bf16.msra.mxu0 0
    %173 = vmatprep.subr.bf16.mxu0 0
    %174 = vmatpush1.bf16.msra.mxu0 0
    %175 = vmatprep.subr.bf16.mxu0 0
    %176 = vmatpush1.bf16.msra.mxu0 0
    %177 = vmatprep.subr.bf16.mxu0 0
    %178 = vmatpush1.bf16.msra.mxu0 0
    %179 = vmatprep.mubr.bf16.mxu0 0
    %180 = vmatmul.mubr.bf16.gmra.mrb[0].mxu0 %v145
    %v181 = vpop.f32.mrb[0].mxu0
    %v182 = vadd.f32 %v117, %v181
    %v183 = vpop.f32.mrb[0].mxu0
    %v184 = vpop.f32.mrb[0].mxu0
    %v185 = vadd.f32 %v117, %v184
    %v186 = vpop.f32.mrb[0].mxu0
    %187 = vdwg.mxu0
    %188 = vst.msk [vmem:[#allocation2] sm:$0xff] %vm48, %v182
    %189 = vst.msk [vmem:[#allocation2 + $0x8] sm:$0xff] %vm48, %v185
    // Predicated region
    $region22: #{tpu_custom_call.1} parent=1 // pred_check
      _
    $region23: #{tpu_custom_call.1} parent=1 // pred_check_branch
      %191 = sbr.rel (0) target = $region25
    $region24: #{tpu_custom_call.1} parent=1 // pred_region
      %s193 = ssub.s32 256, 256
      %194 = vsyncadd [#allocation3], %s193
      %s195 = sshll.u32 [#allocation2], 4
      %s196 = int_to_ptr.vmem [resolvable:$true] %s195
      %201 = dma.vmem_to_hbm [thread:$0]  %s196, 256, %s5, [#allocation3], 128, 128, 8
    $region25: #{tpu_custom_call.1} parent=1 // pred_fallthru
      _
    // Predicated region
    $region26: #{tpu_custom_call.1} parent=1 // pred_check
      _
    $region27: #{tpu_custom_call.1} parent=1 // pred_check_branch
      %203 = sbr.rel (0) target = $region29
    $region28: #{tpu_custom_call.1} parent=1 // pred_region
      %204 = dma.done [#allocation3], 256
    $region29: #{tpu_custom_call.1} parent=1 // pred_fallthru
      _
    %205 = vsyncpa [#allocation3], 1

</llo_original>
